<compile_context>
chip_gen: v5e
topology: v5e:2x2
jax: 0.10.0
libtpu: 0.0.40
codegen_flags: <defaults>
</compile_context>

<pallas_src>
import jax
import jax.numpy as jnp
from jax.experimental import pallas as pl
from jax.experimental.pallas import tpu as pltpu


def _abs_pos_emb_kernel(emb_ref, o_ref):
    # emb_ref: (1, bl)  lane-dense slice of the flattened embedding table
    # o_ref:   (B, bl)  same flat slice of the output, all batch rows at once
    o_ref[...] = jnp.broadcast_to(emb_ref[...].astype(o_ref.dtype), o_ref.shape)


def _round_up(x, m):
    return ((x + m - 1) // m) * m


def _round_down(x, m):
    return (x // m) * m


def absolute_positional_embedding(
    x,
    emb_table,
    *,
    out_dtype=None,
    target_block_bytes=4 << 20,      # ~4 MiB of output writeback per grid step
    vmem_budget_bytes=24 << 20,      # pipeline buffers; < 32 MiB scoped default (v7x-safe)
    min_parallel_tiles=2,            # keep >=2 parallel steps for v7x megacore
    xla_fallback_bytes=1 << 19,      # <=512 KiB outputs: let XLA fuse the broadcast
):
    """x: [B, N] (only its shape is used); emb_table: [max_seq_len, D].

    Returns [B, N, D] in `out_dtype` (defaults to emb_table.dtype), matching
    the PyTorch module's main (seq_len < max_seq_len) branch.
    """
    B, N = x.shape[0], x.shape[1]
    max_seq_len, D = emb_table.shape
    assert N < max_seq_len, "only the seq_len < max_seq_len path is implemented"

    out_dtype = jnp.dtype(out_dtype) if out_dtype is not None else jnp.dtype(emb_table.dtype)
    in_itemsize = jnp.dtype(emb_table.dtype).itemsize
    out_itemsize = out_dtype.itemsize

    # Tiny-problem escape hatch: a grid loop on one TC is pure overhead for a
    # few-KiB copy; XLA's fused broadcast is strictly better there.
    if B * N * D * out_itemsize <= xla_fallback_bytes:
        return jnp.broadcast_to(emb_table[:N].astype(out_dtype)[None], (B, N, D))

    LANE = 128
    nd = N * D                      # flat elements per batch row actually needed
    nd_pad = _round_up(nd, LANE)
    L = max_seq_len * D             # flat table length

    # ---- lane-tile (bl) selection ------------------------------------------
    # Target ~target_block_bytes of useful output per grid step, capped so that
    # 2 input + 2 output pipeline buffers (with sublane padding) fit the VMEM
    # budget.  bl is always a multiple of 128 (lane-dense, unmasked stores).
    in_rows = 8 * max(1, 4 // in_itemsize)                 # (1, bl) block pads to one sublane tile
    out_rows = _round_up(B, 8 * max(1, 4 // out_itemsize))  # batch rows pad to sublane-tile multiple
    bytes_per_lane_col = 2 * (in_rows * in_itemsize + out_rows * out_itemsize)
    bl_cap = max(LANE, _round_down(vmem_budget_bytes // bytes_per_lane_col, LANE))
    bl_target = max(LANE, _round_down(target_block_bytes // (B * out_itemsize), LANE))

    bl = min(bl_target, bl_cap, nd_pad)
    num_tiles = pl.cdiv(nd_pad, bl)
    # v7x megacore: keep at least `min_parallel_tiles` parallel grid steps when
    # the problem allows it (no-op on single-TC chips beyond tiny extra steps).
    if num_tiles < min_parallel_tiles and nd_pad >= min_parallel_tiles * LANE:
        num_tiles = min_parallel_tiles
    # Spread lanes evenly over tiles (never increases bl -> VMEM cap still holds).
    bl = _round_up(pl.cdiv(nd_pad, num_tiles), LANE)
    num_tiles = pl.cdiv(nd_pad, bl)

    # Free, contiguous row-major views; reshaped back after the call.
    emb_flat = emb_table.reshape(1, L)

    out2d = pl.pallas_call(
        _abs_pos_emb_kernel,
        out_shape=jax.ShapeDtypeStruct((B, nd), out_dtype),
        grid_spec=pltpu.PrefetchScalarGridSpec(
            num_scalar_prefetch=0,
            grid=(num_tiles,),
            in_specs=[
                # Flat columns [j*bl, j*bl+bl) of the table; only touched
                # blocks are DMA'd.  Ragged/over-the-end boundary blocks are
                # padded by Pallas; the padded lanes only feed output lanes
                # >= N*D, which are dropped on writeback.
                pl.BlockSpec((1, bl), lambda j: (0, j)),
            ],
            out_specs=pl.BlockSpec((B, bl), lambda j: (0, j)),
        ),
        compiler_params=pltpu.CompilerParams(
            dimension_semantics=("parallel",),
        ),
        cost_estimate=pl.CostEstimate(
            flops=0,
            transcendentals=0,
            bytes_accessed=nd * in_itemsize + B * nd * out_itemsize,
        ),
    )(emb_flat)

    return out2d.reshape(B, N, D)


if __name__ == "__main__":
    # Small shapes consistent with the module's forward.
    batch = 2
    seq_len = 8
    dim = 32
    max_seq_len = 64

    key = jax.random.PRNGKey(0)
    k_emb, k_x = jax.random.split(key)

    # nn.Embedding(max_seq_len, dim) weights, init uniform(-1/4, 1/4) per init_()
    emb_table = jax.random.uniform(
        k_emb, (max_seq_len, dim), dtype=jnp.float32, minval=-0.25, maxval=0.25
    )
    # x: only its shape matters; integer token ids [B, N]
    x = jax.random.randint(k_x, (batch, seq_len), 0, 100, dtype=jnp.int32)

    # Force the Pallas path (default fallback would route this tiny shape to XLA).
    out = absolute_positional_embedding(x, emb_table, xla_fallback_bytes=0)
    out = jax.block_until_ready(out)

    ref = jnp.broadcast_to(emb_table[:seq_len][None, :, :], (batch, seq_len, dim))
    assert out.shape == (batch, seq_len, dim)
    assert out.dtype == emb_table.dtype
    assert jnp.allclose(out, ref), "mismatch vs reference"

    # Ragged-boundary check (review concern): N*D not a multiple of 128 and the
    # last input block extends past the end of the table -> valid rows must
    # still read the correct table entries, garbage must not land in the output.
    b2, n2, d2, m2 = 3, 45, 24, 50
    k2, _ = jax.random.split(k_emb)
    emb2 = jax.random.uniform(k2, (m2, d2), dtype=jnp.float32, minval=-0.25, maxval=0.25)
    x2 = jnp.zeros((b2, n2), dtype=jnp.int32)
    out2 = jax.block_until_ready(
        absolute_positional_embedding(x2, emb2, xla_fallback_bytes=0)
    )
    ref2 = jnp.broadcast_to(emb2[:n2][None, :, :], (b2, n2, d2))
    assert out2.shape == (b2, n2, d2)
    assert jnp.allclose(out2, ref2), "mismatch vs reference (ragged boundary)"

    print("KERNEL_OK")
</pallas_src>

<mosaic_0001>
module attributes {stable_mosaic.version = 11 : i64} {
  func.func @_abs_pos_emb_kernel(%arg0: i32, %arg1: memref<1x128xf32, #tpu.memory_space<vmem>>, %arg2: memref<2x128xf32, #tpu.memory_space<vmem>>) attributes {dimension_semantics = [#tpu.dimension_semantics<parallel>], iteration_bounds = array<i64: 2>, scalar_prefetch = 0 : i64, scratch_operands = 0 : i64, tpu.core_type = #tpu.core_type<tc>, window_params = [{transform_indices = @transform_0, window_bounds = array<i64: 1, 128>}, {transform_indices = @transform_1, window_bounds = array<i64: 2, 128>}]} {
    %c0 = arith.constant 0 : index
    %c0_0 = arith.constant 0 : index
    %0 = vector.load %arg1[%c0, %c0_0] : memref<1x128xf32, #tpu.memory_space<vmem>>, vector<1x128xf32>
    %1 = vector.shape_cast %0 : vector<1x128xf32> to vector<1x128xf32>
    %2 = vector.broadcast %1 : vector<1x128xf32> to vector<2x128xf32>
    %c0_1 = arith.constant 0 : index
    %c0_2 = arith.constant 0 : index
    %3 = vector.load %arg2[%c0_1, %c0_2] : memref<2x128xf32, #tpu.memory_space<vmem>>, vector<2x128xf32>
    tpu.vector_store %arg2[%c0_1, %c0_2], %2 {strides = array<i32>} : memref<2x128xf32, #tpu.memory_space<vmem>>, vector<2x128xf32>,
    return
  }
  func.func @transform_0(%arg0: i32) -> (i32, i32) {
    %c0_i32 = arith.constant 0 : i32
    %c0_i32_0 = arith.constant 0 : i32
    return %c0_i32, %arg0 : i32, i32
  }
  func.func @transform_1(%arg0: i32) -> (i32, i32) {
    %c0_i32 = arith.constant 0 : i32
    %c0_i32_0 = arith.constant 0 : i32
    return %c0_i32, %arg0 : i32, i32
  }
}

</mosaic_0001>

<llo_original>
// kernel: tpu_custom_call.1
$region0: #{tpu_custom_call.1}
  #allocation0 [shape = 'u32[]', space=smem, size = 0x4, offset = 0x4, fixed_abs, tag = 'smem constant byte address 0x4 - core index']
  #allocation1 [shape = 'u32[72,128]{1,0:T(1,128)}', space=vmem, size = 0x9000, scoped, tag = 'internal scratch']
  %s0 = inlined_call_operand.hbm [shape: f32[1,2048], index: 0, kind: input, shape index: {}]
  %s1 = inlined_call_operand.hbm [shape: f32[2,256], index: 1, kind: output, shape index: {}]
  %s2 = sld [smem:[#allocation0]]
  $region41: #{tpu_custom_call.1} parent=0
    _
  %s4 = ssub.s32 1, %s2
  %s5 = scalar_select 0, %s4, %s2
  $region1: #{tpu_custom_call.1} parent=0
    #allocation2 [shape = 'u8[1024]{0}', space=vmem, size = 0x400, scoped, tag = 'input window, operand 0']
    #allocation3 [shape = 's32[2]{0}', space=sflag, size = 0x8, scoped, tag = 'scoped memory for tpu_custom_call.1']
    #allocation4 [shape = 's32[2]{0}', space=sflag, size = 0x8, scoped, tag = 'scoped memory for tpu_custom_call.1']
    #allocation5 [shape = 'u8[2048]{0}', space=vmem, size = 0x800, scoped, tag = 'output window, operand 0']
    %6 = vsyncpa [#allocation3], 0
    %s7 = scalar_lea.sflag [#allocation3], 1
    %8 = vsyncpa %s7, 0
    %9 = vsyncpa [#allocation4], 0
    %s10 = scalar_lea.sflag [#allocation4], 1
    %11 = vsyncpa %s10, 0
    loop: start=0, step=1, limit=4
    $region2: #{tpu_custom_call.1} parent=1 // loop_pre_header
      _
    $region3: #{tpu_custom_call.1} parent=1 // loop_header
      %s13 = sphi 0, %s17
      %p14 = scmp.ge.s32.totalorder %s13, 4
      %s23 = sphi 0, %s25
      %s26 = sphi 0, %s23
      %s27 = sphi 0, %s26
      %s43 = sphi 0, %s27
      %s49 = sphi 0, %s51
      %s52 = sphi 0, %s49
      %s53 = sphi 0, %s52
      %s69 = sphi 0, %s53
    $region4: #{tpu_custom_call.1} parent=1 // loop_header_branch
      %16 = sbr.rel (%p14) target = $region8
    $region5: #{tpu_custom_call.1} parent=1 // loop_body
      %s18 = ssub.s32 %s13, 1
      %s19 = ssub.s32 %s13, 2
      %s20 = sadd.s32 %s13, 1
      %s21 = ssub.s32 %s13, %s20
      %p22 = scmp.eq.s32.totalorder %s21, 0
      %s24 = sadd.s32 %s23, 1
      %s25 = scalar_select %p22, %s23, %s24
      %p28 = pneg %p22
      %p29 = scmp.eq.s32.totalorder %s13, 1
      %p30 = por %p28, %p29
      %p31 = scmp.ne.s32.totalorder %s23, %s26
      %p32 = scmp.eq.s32.totalorder %s13, 0
      %p33 = por %p31, %p32
      %p34 = scmp.ne.s32.totalorder %s23, %s26
      %p35 = scmp.eq.s32.totalorder %s18, 1
      %p36 = por %p34, %p35
      %p37 = scmp.ne.s32.totalorder %s26, %s27
      %p38 = scmp.eq.s32.totalorder %s18, 0
      %p39 = por %p37, %p38
      %p40 = scmp.ne.s32.totalorder %s26, %s27
      %p41 = scmp.eq.s32.totalorder %s19, 1
      %p42 = por %p40, %p41
      %p44 = scmp.ne.s32.totalorder %s27, %s43
      %p45 = scmp.eq.s32.totalorder %s19, 0
      %p46 = por %p44, %p45
      %s47 = ssub.s32 %s13, %s20
      %p48 = scmp.eq.s32.totalorder %s47, 0
      %s50 = sadd.s32 %s49, 1
      %s51 = scalar_select %p48, %s49, %s50
      %p54 = pneg %p48
      %p55 = scmp.eq.s32.totalorder %s13, 1
      %p56 = por %p54, %p55
      %p57 = scmp.ne.s32.totalorder %s49, %s52
      %p58 = scmp.eq.s32.totalorder %s13, 0
      %p59 = por %p57, %p58
      %p60 = scmp.ne.s32.totalorder %s49, %s52
      %p61 = scmp.eq.s32.totalorder %s18, 1
      %p62 = por %p60, %p61
      %p63 = scmp.ne.s32.totalorder %s52, %s53
      %p64 = scmp.eq.s32.totalorder %s18, 0
      %p65 = por %p63, %p64
      %p66 = scmp.ne.s32.totalorder %s52, %s53
      %p67 = scmp.eq.s32.totalorder %s19, 1
      %p68 = por %p66, %p67
      %p70 = scmp.ne.s32.totalorder %s53, %s69
      %p71 = scmp.eq.s32.totalorder %s19, 0
      %p72 = por %p70, %p71
      %p73 = scmp.le.s32.totalorder 1, %s13
      %p74 = scmp.lt.s32.totalorder %s13, 3
      %p75 = pnand %p73, %p74
      %p76 = pneg %p75
      // Predicated region
      $region9: #{tpu_custom_call.1} parent=5 // pred_check
        _
      $region10: #{tpu_custom_call.1} parent=5 // pred_check_branch
        %78 = sbr.rel (%p75) target = $region12
      $region11: #{tpu_custom_call.1} parent=5 // pred_region
        %s79 = ssub.s32 %s13, 1
      $region12: #{tpu_custom_call.1} parent=5 // pred_fallthru
        _
      %p80 = scmp.lt.s32.totalorder %s13, 2
      // Predicated region
      $region13: #{tpu_custom_call.1} parent=5 // pred_check
        %p81 = pneg %p80
      $region14: #{tpu_custom_call.1} parent=5 // pred_check_branch
        %83 = sbr.rel (%p81) target = $region16
      $region15: #{tpu_custom_call.1} parent=5 // pred_region
        // Predicated region
        $region17: #{tpu_custom_call.1} parent=15 // pred_check
          %p84 = pneg %p33
        $region18: #{tpu_custom_call.1} parent=15 // pred_check_branch
          %86 = sbr.rel (%p84) target = $region20
        $region19: #{tpu_custom_call.1} parent=15 // pred_region
          %s87 = sand.u32 %s23, 1
          %s88 = scalar_lea.sflag [#allocation3], %s87
          %s89 = sand.u32 %s23, 1
          %s90 = scalar_lea.vmem [#allocation2], %s89
          %92 = vsyncadd %s88, 0
          %s93 = scalar_lea.hbm %s0, %s13
          %s95 = sshll.u32 %s93, 4
          %s96 = int_to_ptr.hbm [resolvable:$true] %s95
          %s97 = sshll.u32 %s90, 4
          %s98 = int_to_ptr.vmem [resolvable:$true] %s97
          %100 = dma.hbm_to_vmem [thread:$0]  %s96, 16, %s98, %s88
        $region20: #{tpu_custom_call.1} parent=15 // pred_fallthru
          _
      $region16: #{tpu_custom_call.1} parent=5 // pred_fallthru
        _
      %p101 = scmp.le.s32.totalorder 1, %s13
      %p102 = scmp.lt.s32.totalorder %s13, 3
      %p103 = pnand %p101, %p102
      %p104 = pneg %p103
      // Predicated region
      $region21: #{tpu_custom_call.1} parent=5 // pred_check
        _
      $region22: #{tpu_custom_call.1} parent=5 // pred_check_branch
        %106 = sbr.rel (%p103) target = $region24
      $region23: #{tpu_custom_call.1} parent=5 // pred_region
        %s107 = ssub.s32 %s13, 1
        %s108 = sand.u32 %s26, 1
        %s109 = scalar_lea.sflag [#allocation3], %s108
        %s110 = sand.u32 %s26, 1
        %s111 = scalar_lea.vmem [#allocation2], %s110
        // Predicated region
        $region25: #{tpu_custom_call.1} parent=23 // pred_check
          %p112 = pneg %p39
        $region26: #{tpu_custom_call.1} parent=23 // pred_check_branch
          %114 = sbr.rel (%p112) target = $region28
        $region27: #{tpu_custom_call.1} parent=23 // pred_region
          %116 = dma.done %s109, 16
        $region28: #{tpu_custom_call.1} parent=23 // pred_fallthru
          _
        %s117 = sand.u32 %s26, 1
        %s118 = scalar_lea.sflag [#allocation3], %s117
        %s119 = sand.u32 %s26, 1
        %s120 = scalar_lea.vmem [#allocation2], %s119
        %p121 = pneg %p39
        %p122 = pneg %p36
        %p123 = pneg %p65
        %p124 = pneg %p62
        %s125 = sand.u32 %s52, 1
        %s126 = scalar_lea.sflag [#allocation4], %s125
        %s127 = sand.u32 %s52, 1
        %s128 = smul.addr %s127, 2
        %s129 = scalar_lea.vmem [#allocation5], %s128
        %v130 = vld [vmem:[%s111] sm:$0x1]
        %v132 = vperm.slane %v130, 0
        %134 = vst [vmem:[%s129] sm:$0x3] %v132
        %s135 = sand.u32 %s52, 1
        %s136 = scalar_lea.sflag [#allocation4], %s135
        %s137 = sand.u32 %s52, 1
        %s138 = smul.addr %s137, 2
        %s139 = scalar_lea.vmem [#allocation5], %s138
        // Predicated region
        $region29: #{tpu_custom_call.1} parent=23 // pred_check
          %p140 = pneg %p62
        $region30: #{tpu_custom_call.1} parent=23 // pred_check_branch
          %142 = sbr.rel (%p140) target = $region32
        $region31: #{tpu_custom_call.1} parent=23 // pred_region
          %144 = vsyncadd %s136, 0
          %s145 = smul.addr %s18, 2
          %s146 = scalar_lea.hbm %s1, %s145
          %s148 = sshll.u32 %s139, 4
          %s149 = int_to_ptr.vmem [resolvable:$true] %s148
          %s150 = sshll.u32 %s146, 4
          %s151 = int_to_ptr.hbm [resolvable:$true] %s150
          %153 = dma.vmem_to_hbm [thread:$0]  %s149, 32, %s151, %s136
        $region32: #{tpu_custom_call.1} parent=23 // pred_fallthru
          _
      $region24: #{tpu_custom_call.1} parent=5 // pred_fallthru
        _
      %p154 = scmp.le.s32.totalorder 2, %s13
      // Predicated region
      $region33: #{tpu_custom_call.1} parent=5 // pred_check
        %p155 = pneg %p154
      $region34: #{tpu_custom_call.1} parent=5 // pred_check_branch
        %157 = sbr.rel (%p155) target = $region36
      $region35: #{tpu_custom_call.1} parent=5 // pred_region
        %s158 = ssub.s32 %s13, 2
        // Predicated region
        $region37: #{tpu_custom_call.1} parent=35 // pred_check
          %p159 = pneg %p68
        $region38: #{tpu_custom_call.1} parent=35 // pred_check_branch
          %161 = sbr.rel (%p159) target = $region40
        $region39: #{tpu_custom_call.1} parent=35 // pred_region
          %s162 = sand.u32 %s53, 1
          %s163 = scalar_lea.sflag [#allocation4], %s162
          %s164 = sand.u32 %s53, 1
          %s165 = smul.addr %s164, 2
          %s166 = scalar_lea.vmem [#allocation5], %s165
          %168 = dma.done %s163, 32
        $region40: #{tpu_custom_call.1} parent=35 // pred_fallthru
          _
      $region36: #{tpu_custom_call.1} parent=5 // pred_fallthru
        _
    $region6: #{tpu_custom_call.1} parent=1 // loop_footer
      %s17 = sadd.s32 1, %s13
    $region7: #{tpu_custom_call.1} parent=1 // loop_footer_branch
      %12 = sbr.rel target = $region3
    $region8: #{tpu_custom_call.1} parent=1 // loop_exit
      _
    %169 = vsyncpa [#allocation3], 1
    %s170 = scalar_lea.sflag [#allocation3], 1
    %171 = vsyncpa %s170, 1
    %172 = vsyncpa [#allocation4], 1
    %s173 = scalar_lea.sflag [#allocation4], 1
    %174 = vsyncpa %s173, 1

</llo_original>
